<compile_context>
chip_gen: v5e
topology: v5e:2x2
jax: 0.10.0
libtpu: 0.0.40
codegen_flags: <defaults>
</compile_context>

<pallas_src>
import functools

import jax
import jax.numpy as jnp
from jax.experimental import pallas as pl
from jax.experimental.pallas import tpu as pltpu

_LANE = 128
_SUBLANE = 8


def _round_up(n, m):
    return (n + m - 1) // m * m


def head_kernel(x_ref, w_ref, b_ref, o_ref):
    # One fused step: (bb, lat) @ (lat, bc) on the MXU, f32 accumulate, bias
    # add on the VPU.  bf16 cast is done here (in-kernel, free under DMA slack)
    # rather than as a separate XLA pass in the wrapper.
    x = x_ref[...].astype(jnp.bfloat16)
    w = w_ref[...].astype(jnp.bfloat16)
    y = jnp.dot(x, w, preferred_element_type=jnp.float32)
    o_ref[...] = (y + b_ref[...].astype(jnp.float32)).astype(o_ref.dtype)


def _choose_tiles(batch, lat, classes, *, target_bb=1024, target_bc=2048,
                  vmem_budget_bytes=24 << 20):
    """Pick (batch_tile, classes_tile).

    * Single tile over the batch when it fits (grid=1: no per-step overhead,
      one big roofline-friendly DMA); only tile when B > target_bb.
    * classes tiled only when very wide (multiple of 128 so W / out blocks stay
      (8,128)-legal and output stores stay lane-dense per column tile).
    * VMEM guard: keep double-buffered x/out tiles + resident W/bias inside a
      conservative budget so the same sizing works on v7x's 64 MiB VMEM.
    """
    bc = classes if classes <= target_bc else target_bc        # target_bc % 128 == 0
    bb = batch if batch <= target_bb else target_bb             # target_bb % 8  == 0

    lat_p = _round_up(lat, _LANE)          # lat lane-pads to >=128 in VMEM (16x for lat=8)
    bc_p = _round_up(bc, _LANE)
    lat_s = _round_up(lat, _SUBLANE)

    def fits(bb_):
        x_tile = bb_ * lat_p * 4
        o_tile = bb_ * bc_p * 4
        w_tile = lat_s * bc_p * 4
        b_tile = _SUBLANE * bc_p * 4
        return 2 * (x_tile + o_tile + w_tile + b_tile) <= vmem_budget_bytes

    while bb > _SUBLANE and not fits(bb):
        bb = max(_SUBLANE, _round_up(bb // 2, _SUBLANE))
    return bb, bc


@functools.partial(jax.jit, static_argnames=("out_dtype", "block_b"))
def head_forward(x, w, b, *, out_dtype=jnp.float32, block_b=None):
    """x: (B, lat) f32; w: (lat, classes); b: (1, classes) or (classes,)."""
    B, lat = x.shape
    classes = w.shape[-1]
    b2 = b.reshape(1, classes)

    target_bb = block_b if block_b is not None else 1024
    bb, bc = _choose_tiles(B, lat, classes, target_bb=target_bb)
    grid = (pl.cdiv(B, bb), pl.cdiv(classes, bc))

    return pl.pallas_call(
        head_kernel,
        out_shape=jax.ShapeDtypeStruct((B, classes), out_dtype),
        grid=grid,
        in_specs=[
            pl.BlockSpec((bb, lat), lambda i, j: (i, 0)),    # x: tiled over batch
            pl.BlockSpec((lat, bc), lambda i, j: (0, j)),    # W: resident per column tile
            pl.BlockSpec((1, bc), lambda i, j: (0, j)),      # bias: resident per column tile
        ],
        out_specs=pl.BlockSpec((bb, bc), lambda i, j: (i, j)),
        compiler_params=pltpu.CompilerParams(
            # Both axes are independent output tiles; shards across the two
            # TensorCores on v7x whenever the grid has >= 2 steps.
            dimension_semantics=("parallel", "parallel"),
        ),
    )(x, w, b2)


def init_head_params(key, lat_size, classes):
    """PyTorch nn.Linear-style uniform init; W stored as (in, out) == weight.T.
    For a large production head, pre-cast W to bf16 once here instead of per call
    (the kernel's in-body astype then becomes a no-op)."""
    kw, kb = jax.random.split(key)
    bound = 1.0 / (lat_size ** 0.5)
    w = jax.random.uniform(kw, (lat_size, classes), jnp.float32, -bound, bound)
    b = jax.random.uniform(kb, (1, classes), jnp.float32, -bound, bound)
    return w, b


def head_reference(x, w, b):
    """Pure-JAX f32 reference of the PyTorch forward."""
    return x @ w + b.reshape(1, -1)


if __name__ == "__main__":
    lat_size = 8
    classes = 10

    key = jax.random.PRNGKey(0)
    key, kx1, kx2 = jax.random.split(key, 3)
    w, b = init_head_params(key, lat_size, classes)

    # Case 1: small batch, single tile (grid == (1, 1)) — no pad, no slice.
    x1 = jax.random.normal(kx1, (16, lat_size), jnp.float32)
    out1 = jax.block_until_ready(head_forward(x1, w, b))
    ref1 = head_reference(x1, w, b)
    assert out1.shape == ref1.shape, out1.shape
    # bf16 matmul operands with f32 accumulation -> loosened tolerance vs f32 ref.
    assert jnp.allclose(out1, ref1, atol=2e-2, rtol=2e-2), float(
        jnp.max(jnp.abs(out1 - ref1)))

    # Case 2: ragged batch (B=13 with block_b=8) — verifies Pallas masks the
    # partial last output block on writeback with no wrapper-side padding.
    x2 = jax.random.normal(kx2, (13, lat_size), jnp.float32)
    out2 = jax.block_until_ready(head_forward(x2, w, b, block_b=8))
    ref2 = head_reference(x2, w, b)
    assert out2.shape == ref2.shape, out2.shape
    assert jnp.allclose(out2, ref2, atol=2e-2, rtol=2e-2), float(
        jnp.max(jnp.abs(out2 - ref2)))

    print("KERNEL_OK")
</pallas_src>

<mosaic_0001>
module attributes {stable_mosaic.version = 11 : i64} {
  func.func @head_kernel(%arg0: i32, %arg1: i32, %arg2: memref<16x8xf32, #tpu.memory_space<vmem>>, %arg3: memref<8x10xf32, #tpu.memory_space<vmem>>, %arg4: memref<1x10xf32, #tpu.memory_space<vmem>>, %arg5: memref<16x10xf32, #tpu.memory_space<vmem>>) attributes {dimension_semantics = [#tpu.dimension_semantics<parallel>, #tpu.dimension_semantics<parallel>], iteration_bounds = array<i64: 1, 1>, scalar_prefetch = 0 : i64, scratch_operands = 0 : i64, tpu.core_type = #tpu.core_type<tc>, window_params = [{transform_indices = @transform_0, window_bounds = array<i64: 16, 8>}, {transform_indices = @transform_1, window_bounds = array<i64: 8, 10>}, {transform_indices = @transform_2, window_bounds = array<i64: 1, 10>}, {transform_indices = @transform_3, window_bounds = array<i64: 16, 10>}]} {
    %c0 = arith.constant 0 : index
    %c0_0 = arith.constant 0 : index
    %0 = vector.load %arg2[%c0, %c0_0] : memref<16x8xf32, #tpu.memory_space<vmem>>, vector<16x8xf32>
    %1 = arith.truncf %0 : vector<16x8xf32> to vector<16x8xbf16>
    %c0_1 = arith.constant 0 : index
    %c0_2 = arith.constant 0 : index
    %2 = vector.load %arg3[%c0_1, %c0_2] : memref<8x10xf32, #tpu.memory_space<vmem>>, vector<8x10xf32>
    %3 = arith.truncf %2 : vector<8x10xf32> to vector<8x10xbf16>
    %cst = arith.constant dense<0.000000e+00> : vector<16x10xf32>
    %4 = tpu.matmul %1, %3, %cst {dimension_numbers = #tpu.dot_dimension_numbers<[1], [0], [0], [1], [0, 0, 1, 1], [], []>} : vector<16x8xbf16>, vector<8x10xbf16>, vector<16x10xf32> -> vector<16x10xf32>
    %c0_3 = arith.constant 0 : index
    %c0_4 = arith.constant 0 : index
    %5 = vector.load %arg4[%c0_3, %c0_4] : memref<1x10xf32, #tpu.memory_space<vmem>>, vector<1x10xf32>
    %6 = vector.broadcast %5 : vector<1x10xf32> to vector<16x10xf32>
    %7 = arith.addf %4, %6 : vector<16x10xf32>
    %c0_5 = arith.constant 0 : index
    %c0_6 = arith.constant 0 : index
    %8 = vector.load %arg5[%c0_5, %c0_6] : memref<16x10xf32, #tpu.memory_space<vmem>>, vector<16x10xf32>
    tpu.vector_store %arg5[%c0_5, %c0_6], %7 {strides = array<i32>} : memref<16x10xf32, #tpu.memory_space<vmem>>, vector<16x10xf32>,
    return
  }
  func.func @transform_0(%arg0: i32, %arg1: i32) -> (i32, i32) {
    %c0_i32 = arith.constant 0 : i32
    %c0_i32_0 = arith.constant 0 : i32
    return %arg0, %c0_i32 : i32, i32
  }
  func.func @transform_1(%arg0: i32, %arg1: i32) -> (i32, i32) {
    %c0_i32 = arith.constant 0 : i32
    %c0_i32_0 = arith.constant 0 : i32
    return %c0_i32, %arg1 : i32, i32
  }
  func.func @transform_2(%arg0: i32, %arg1: i32) -> (i32, i32) {
    %c0_i32 = arith.constant 0 : i32
    %c0_i32_0 = arith.constant 0 : i32
    return %c0_i32, %arg1 : i32, i32
  }
  func.func @transform_3(%arg0: i32, %arg1: i32) -> (i32, i32) {
    %c0_i32 = arith.constant 0 : i32
    return %arg0, %arg1 : i32, i32
  }
}

</mosaic_0001>

<llo_original>
// kernel: head_forward.1
$region0: #{head_forward.1}
  #allocation0 [shape = 'u32[]', space=smem, size = 0x4, offset = 0x4, fixed_abs, tag = 'smem constant byte address 0x4 - core index']
  #allocation1 [shape = 'u32[72,128]{1,0:T(1,128)}', space=vmem, size = 0x9000, scoped, tag = 'internal scratch']
  %s0 = inlined_call_operand.vmem [shape: f32[16,8], index: 0, kind: input, shape index: {}]
  %s1 = inlined_call_operand.vmem [shape: f32[8,10], index: 1, kind: input, shape index: {}]
  %s2 = inlined_call_operand.vmem [shape: f32[1,10], index: 2, kind: input, shape index: {}]
  %s3 = inlined_call_operand.hbm [shape: f32[16,10], index: 3, kind: output, shape index: {}]
  %s4 = sld [smem:[#allocation0]]
  $region22: #{head_forward.1} parent=0
    _
  %s6 = ssub.s32 1, %s4
  %s7 = scalar_select 0, %s6, %s4
  $region1: #{head_forward.1} parent=0
    #allocation2 [shape = 'u8[8192]{0}', space=vmem, size = 0x2000, scoped, tag = 'output window, operand 0, single buffered']
    #allocation3 [shape = 's32[1]{0}', space=sflag, size = 0x4, scoped, tag = 'scoped memory for head_forward.1']
    %8 = vsyncpa [#allocation3], 0
    // Predicated region
    $region2: #{head_forward.1} parent=1 // pred_check
      _
    $region3: #{head_forward.1} parent=1 // pred_check_branch
      %10 = sbr.rel (0) target = $region5
    $region4: #{head_forward.1} parent=1 // pred_region
      _
    $region5: #{head_forward.1} parent=1 // pred_fallthru
      _
    // Predicated region
    $region6: #{head_forward.1} parent=1 // pred_check
      _
    $region7: #{head_forward.1} parent=1 // pred_check_branch
      %12 = sbr.rel (0) target = $region9
    $region8: #{head_forward.1} parent=1 // pred_region
      _
    $region9: #{head_forward.1} parent=1 // pred_fallthru
      _
    // Predicated region
    $region10: #{head_forward.1} parent=1 // pred_check
      _
    $region11: #{head_forward.1} parent=1 // pred_check_branch
      %14 = sbr.rel (0) target = $region13
    $region12: #{head_forward.1} parent=1 // pred_region
      _
    $region13: #{head_forward.1} parent=1 // pred_fallthru
      _
    %v16 = vld [vmem:[%s0] sm:$0xff]
    %v17 = vld [vmem:[%s0 + $0x8] sm:$0xff]
    %v18 = vpack.c.bf16 %v17, %v16
    %v19 = vld [vmem:[%s1] sm:$0xff]
    %v20 = vpack.c.bf16 %v19, %v19
    %v21 = vld [vmem:[%s2] sm:$0x1]
    %v23 = vperm.slane %v21, 0
    %vm25 = vcmask 64512
    %v27 = vsel %vm25, %v18, 0
    %vm29 = vcmask 1043456
    %v31 = vsel %vm29, %v20, 0
    %33 = vmatpush.bf16.msra.mxu0 0
    %34 = vmatpush.bf16.msra.mxu0 0
    %35 = vmatpush.bf16.msra.mxu0 0
    %36 = vmatpush.bf16.msra.mxu0 0
    %37 = vmatpush.bf16.msra.mxu0 0
    %38 = vmatpush.bf16.msra.mxu0 0
    %39 = vmatpush.bf16.msra.mxu0 0
    %40 = vmatpush.bf16.msra.mxu0 %v31
    %41 = vmatmul.bf16.gmra.mxu0 %v27
    %v42 = vpop.f32.mrf.mxu0
    %v43 = vadd.f32 %v23, %v42
    %v44 = vpop.f32.mrf.mxu0
    %v45 = vadd.f32 %v23, %v44
    %46 = vdwg.mxu0
    %vm47 = vcmask 80896
    %48 = vst.msk [vmem:[#allocation2] sm:$0xff] %vm47, %v43
    %49 = vst.msk [vmem:[#allocation2 + $0x8] sm:$0xff] %vm47, %v45
    // Predicated region
    $region14: #{head_forward.1} parent=1 // pred_check
      _
    $region15: #{head_forward.1} parent=1 // pred_check_branch
      %51 = sbr.rel (0) target = $region17
    $region16: #{head_forward.1} parent=1 // pred_region
      %53 = vsyncadd [#allocation3], 0
      %s54 = sshll.u32 [#allocation2], 4
      %s55 = int_to_ptr.vmem [resolvable:$true] %s54
      %s56 = sshll.u32 %s3, 4
      %s57 = int_to_ptr.hbm [resolvable:$true] %s56
      %62 = dma.vmem_to_hbm [thread:$0]  %s55, 256, %s57, [#allocation3], 128, 128, 8
    $region17: #{head_forward.1} parent=1 // pred_fallthru
      _
    // Predicated region
    $region18: #{head_forward.1} parent=1 // pred_check
      _
    $region19: #{head_forward.1} parent=1 // pred_check_branch
      %64 = sbr.rel (0) target = $region21
    $region20: #{head_forward.1} parent=1 // pred_region
      %66 = dma.done [#allocation3], 256
    $region21: #{head_forward.1} parent=1 // pred_fallthru
      _
    %67 = vsyncpa [#allocation3], 1

</llo_original>
